<compile_context>
chip_gen: v7x
topology: tpu7x:2x2x1
jax: 0.10.0
libtpu: 0.0.40
codegen_flags: <defaults>
</compile_context>

<pallas_src>
import jax
import jax.numpy as jnp
from jax import lax
from jax.experimental import pallas as pl
from jax.experimental.pallas import tpu as pltpu


# ----------------------------------------------------------------------------
# Kernel: fused masked sparse aggregation + bias + ReLU.
#
#   scalar-prefetch (SMEM): row_ptr  (N_pad+1,) int32   CSR offsets by dst
#                           src      (E,)       int32   source node per edge
#                           dst      (E,)       int32   destination node per edge
#   SMEM input            : mask     (E,)       f32     per-edge mask (changes per call)
#   VMEM inputs           : xw       (N_pad, HP) f32    hoisted x @ W (padded)
#                           bias     (1, HP)     f32
#   VMEM output           : o        (tm, HP)    f32    one destination-row tile
# ----------------------------------------------------------------------------
def _masked_agg_kernel(row_ptr_ref, src_ref, dst_ref,   # scalar prefetch (SMEM)
                       mask_ref,                        # SMEM input
                       xw_ref, b_ref,                   # VMEM inputs
                       o_ref):                          # VMEM output block
    tm = o_ref.shape[0]
    row0 = pl.program_id(0) * tm          # first destination node of this tile
    e_lo = row_ptr_ref[row0]              # edges are sorted by dst, so this
    e_hi = row_ptr_ref[row0 + tm]         # tile owns a contiguous edge range

    o_ref[...] = jnp.zeros_like(o_ref)

    def body(e, carry):
        d = dst_ref[e] - row0             # local row inside the tile
        s = src_ref[e]
        m = mask_ref[e]
        # gather the pre-transformed source row, scale by the edge mask,
        # scatter-accumulate into the destination row (f32 accumulation).
        o_ref[d, :] = o_ref[d, :] + m * xw_ref[s, :]
        return carry

    lax.fori_loop(e_lo, e_hi, body, 0)

    # finalize: bias + ReLU on the lane-dense (tm, 128) tile
    o_ref[...] = jnp.maximum(o_ref[...] + b_ref[...], 0.0)


def sparse_masked_gcn(prep, mask_sorted):
    """Run the fused aggregation kernel; `prep` holds the hoisted graph data."""
    n_pad, hp, tm = prep["n_pad"], prep["hp"], prep["tm"]
    grid = (n_pad // tm,)

    return pl.pallas_call(
        _masked_agg_kernel,
        out_shape=jax.ShapeDtypeStruct((n_pad, hp), jnp.float32),
        grid_spec=pltpu.PrefetchScalarGridSpec(
            num_scalar_prefetch=3,            # row_ptr, src, dst -> SMEM
            grid=grid,
            in_specs=[
                # per-edge mask: small f32 table, scalar-indexed -> SMEM
                pl.BlockSpec(memory_space=pltpu.MemorySpace.SMEM),
                # hoisted x @ W, resident in VMEM (block index constant)
                pl.BlockSpec((n_pad, hp), lambda t, *_: (0, 0)),
                # bias (1, 128)
                pl.BlockSpec((1, hp), lambda t, *_: (0, 0)),
            ],
            out_specs=pl.BlockSpec((tm, hp), lambda t, *_: (t, 0)),
        ),
        compiler_params=pltpu.CompilerParams(
            # row-tile axis is independent -> shard across the 2 TCs on v7x
            dimension_semantics=("parallel",),
        ),
    )(prep["row_ptr"], prep["src"], prep["dst"], mask_sorted,
      prep["xw"], prep["b"])


# ----------------------------------------------------------------------------
# Synthetic base model: one masked GCN-style layer (deterministic init).
# ----------------------------------------------------------------------------
class BaseGNN:
    LANE = 128   # lane-dense padded hidden width
    TM = 32      # destination-row tile (multiple of 8)

    def __init__(self, in_features, hidden, key):
        k1, k2 = jax.random.split(key)
        self.w = jax.random.normal(k1, (in_features, hidden), jnp.float32) * 0.1
        self.b = jax.random.normal(k2, (hidden,), jnp.float32) * 0.1
        self.hidden = hidden
        self._cache_key = None
        self._cache = None

    def _prepare(self, x, edge_index):
        """Mask-independent preprocessing (hoisted out of the explainer loop)."""
        N = x.shape[0]
        tm = self.TM
        n_pad = ((N + tm - 1) // tm) * tm
        hp = ((self.hidden + self.LANE - 1) // self.LANE) * self.LANE

        # Hoisted feature transform: bf16 MXU inputs, f32 accumulation.
        xw = jnp.dot(x.astype(jnp.bfloat16), self.w.astype(jnp.bfloat16),
                     preferred_element_type=jnp.float32)
        # TODO(synk): keep xw in bf16 inside the kernel (halves gather bytes)
        # once packed-dtype dynamic-row VMEM loads are not a lowering hazard;
        # f32 is used here for robust dynamic sublane indexing.
        xw_pad = jnp.zeros((n_pad, hp), jnp.float32).at[:N, :self.hidden].set(xw)
        b_pad = jnp.zeros((1, hp), jnp.float32).at[0, :self.hidden].set(self.b)

        # CSR-by-destination: sort edges by dst once; only the mask values get
        # permuted per call (O(E)), never an O(N^2) scatter.
        src, dst = edge_index[0], edge_index[1]
        order = jnp.argsort(dst)
        src_s = src[order].astype(jnp.int32)
        dst_s = dst[order].astype(jnp.int32)
        row_ptr = jnp.searchsorted(
            dst_s, jnp.arange(n_pad + 1, dtype=jnp.int32), side="left"
        ).astype(jnp.int32)

        return dict(n=N, n_pad=n_pad, hp=hp, tm=tm, order=order,
                    xw=xw_pad, b=b_pad, src=src_s, dst=dst_s, row_ptr=row_ptr)

    def __call__(self, x, edge_index, mask):
        # In the GNNExplainer loop x/edge_index are fixed and only the mask
        # changes, so cache the graph/feature preprocessing on object identity.
        key = (id(x), id(edge_index), x.shape, edge_index.shape)
        if self._cache_key != key:
            self._cache = self._prepare(x, edge_index)
            self._cache_key = key
        prep = self._cache

        mask_sorted = mask[prep["order"]].astype(jnp.float32)   # O(E) glue only
        out = sparse_masked_gcn(prep, mask_sorted)
        return out[:prep["n"], :self.hidden]


class MyModelWrapper:
    """Wrap base_model so that GNNExplainer can call it easily (JAX version)."""

    def __init__(self, base_model):
        self.base_model = base_model

    def forward(self, x, edge_index, **kwargs):
        """Use a dummy mask."""
        mask = jnp.ones((edge_index.shape[1],), dtype=jnp.float32)
        if 'edge_mask' in kwargs:
            mask = kwargs['edge_mask']
        assert mask.shape[0] == edge_index.shape[1], (
            'Mask size does not match number of edges.')
        return self.base_model(x, edge_index, mask=mask)

    __call__ = forward


if __name__ == "__main__":
    key = jax.random.PRNGKey(0)
    k_x, k_e, k_m, k_p = jax.random.split(key, 4)

    N, F, H, E = 128, 32, 64, 256  # nodes, in-features, hidden, edges

    x = jax.random.normal(k_x, (N, F), jnp.float32)
    edge_index = jax.random.randint(k_e, (2, E), 0, N, dtype=jnp.int32)

    base_model = BaseGNN(F, H, k_p)
    model = MyModelWrapper(base_model)

    # Path 1: dummy all-ones mask
    out_ones = model(x, edge_index)
    # Path 2: explicit edge_mask kwarg (as GNNExplainer would supply)
    edge_mask = jax.random.uniform(k_m, (E,), jnp.float32)
    out_masked = model(x, edge_index, edge_mask=edge_mask)

    jax.block_until_ready((out_ones, out_masked))

    # Pure-JAX reference (same hoisted bf16-in / f32-acc feature transform).
    xw_ref = jnp.dot(x.astype(jnp.bfloat16), base_model.w.astype(jnp.bfloat16),
                     preferred_element_type=jnp.float32)
    src, dst = edge_index[0], edge_index[1]

    def ref(mask):
        agg = jnp.zeros((N, H), jnp.float32).at[dst].add(mask[:, None] * xw_ref[src])
        return jnp.maximum(agg + base_model.b, 0.0)

    assert jnp.allclose(out_ones, ref(jnp.ones((E,), jnp.float32)),
                        atol=1e-4, rtol=1e-4)
    assert jnp.allclose(out_masked, ref(edge_mask), atol=1e-4, rtol=1e-4)

    print("KERNEL_OK")
</pallas_src>

<mosaic_0001>
module attributes {stable_mosaic.version = 11 : i64} {
  func.func @_masked_agg_kernel(%arg0: i32, %arg1: memref<129xi32, #tpu.memory_space<smem>>, %arg2: memref<256xi32, #tpu.memory_space<smem>>, %arg3: memref<256xi32, #tpu.memory_space<smem>>, %arg4: memref<256xf32, #tpu.memory_space<smem>>, %arg5: memref<128x128xf32, #tpu.memory_space<vmem>>, %arg6: memref<1x128xf32, #tpu.memory_space<vmem>>, %arg7: memref<32x128xf32, #tpu.memory_space<vmem>>) attributes {dimension_semantics = [#tpu.dimension_semantics<parallel>], iteration_bounds = array<i64: 4>, scalar_prefetch = 3 : i64, scratch_operands = 0 : i64, tpu.core_type = #tpu.core_type<tc>, window_params = [{transform_indices = @transform_0, window_bounds = array<i64: 256>}, {pipeline_mode = #tpu.pipeline_mode<synchronous>, transform_indices = @transform_1, window_bounds = array<i64: 128, 128>}, {pipeline_mode = #tpu.pipeline_mode<synchronous>, transform_indices = @transform_2, window_bounds = array<i64: 1, 128>}, {transform_indices = @transform_3, window_bounds = array<i64: 32, 128>}]} {
    %c32_i32 = arith.constant 32 : i32
    %0 = arith.muli %arg0, %c32_i32 : i32
    %1 = arith.index_cast %0 : i32 to index
    %2 = memref.load %arg1[%1] : memref<129xi32, #tpu.memory_space<smem>>
    %c32_i32_0 = arith.constant 32 : i32
    %3 = arith.addi %0, %c32_i32_0 : i32
    %4 = arith.index_cast %3 : i32 to index
    %5 = memref.load %arg1[%4] : memref<129xi32, #tpu.memory_space<smem>>
    %cst = arith.constant 0.000000e+00 : f32
    %6 = vector.broadcast %cst : f32 to vector<32x128xf32>
    %c0 = arith.constant 0 : index
    %c0_1 = arith.constant 0 : index
    %7 = vector.load %arg7[%c0, %c0_1] : memref<32x128xf32, #tpu.memory_space<vmem>>, vector<32x128xf32>
    tpu.vector_store %arg7[%c0, %c0_1], %6 {strides = array<i32>} : memref<32x128xf32, #tpu.memory_space<vmem>>, vector<32x128xf32>,
    %c0_i32 = arith.constant 0 : i32
    %8 = arith.subi %5, %2 : i32
    %9 = arith.addi %2, %8 : i32
    %c1_i32 = arith.constant 1 : i32
    scf.for %arg8 = %2 to %9 step %c1_i32  : i32 {
      %17 = arith.index_cast %arg8 : i32 to index
      %18 = memref.load %arg3[%17] : memref<256xi32, #tpu.memory_space<smem>>
      %19 = arith.subi %18, %0 : i32
      %20 = arith.index_cast %arg8 : i32 to index
      %21 = memref.load %arg2[%20] : memref<256xi32, #tpu.memory_space<smem>>
      %22 = arith.index_cast %arg8 : i32 to index
      %23 = memref.load %arg4[%22] : memref<256xf32, #tpu.memory_space<smem>>
      %24 = arith.index_cast %19 : i32 to index
      %c0_9 = arith.constant 0 : index
      %25 = vector.load %arg7[%24, %c0_9] : memref<32x128xf32, #tpu.memory_space<vmem>>, vector<1x128xf32>
      %26 = vector.shape_cast %25 : vector<1x128xf32> to vector<128xf32>
      %27 = arith.index_cast %21 : i32 to index
      %c0_10 = arith.constant 0 : index
      %28 = vector.load %arg5[%27, %c0_10] : memref<128x128xf32, #tpu.memory_space<vmem>>, vector<1x128xf32>
      %29 = vector.shape_cast %28 : vector<1x128xf32> to vector<128xf32>
      %30 = vector.broadcast %23 : f32 to vector<128xf32>
      %31 = arith.mulf %30, %29 : vector<128xf32>
      %32 = arith.addf %26, %31 : vector<128xf32>
      %33 = arith.index_cast %19 : i32 to index
      %c0_11 = arith.constant 0 : index
      %34 = vector.load %arg7[%33, %c0_11] : memref<32x128xf32, #tpu.memory_space<vmem>>, vector<1x128xf32>
      %35 = vector.shape_cast %34 : vector<1x128xf32> to vector<128xf32>
      %36 = vector.shape_cast %32 : vector<128xf32> to vector<1x128xf32>
      tpu.vector_store %arg7[%33, %c0_11], %36 {strides = array<i32>} : memref<32x128xf32, #tpu.memory_space<vmem>>, vector<1x128xf32>,
    }
    %c0_2 = arith.constant 0 : index
    %c0_3 = arith.constant 0 : index
    %10 = vector.load %arg7[%c0_2, %c0_3] : memref<32x128xf32, #tpu.memory_space<vmem>>, vector<32x128xf32>
    %c0_4 = arith.constant 0 : index
    %c0_5 = arith.constant 0 : index
    %11 = vector.load %arg6[%c0_4, %c0_5] : memref<1x128xf32, #tpu.memory_space<vmem>>, vector<1x128xf32>
    %12 = vector.broadcast %11 : vector<1x128xf32> to vector<32x128xf32>
    %13 = arith.addf %10, %12 : vector<32x128xf32>
    %cst_6 = arith.constant 0.000000e+00 : f32
    %14 = vector.broadcast %cst_6 : f32 to vector<32x128xf32>
    %15 = arith.maximumf %13, %14 : vector<32x128xf32>
    %c0_7 = arith.constant 0 : index
    %c0_8 = arith.constant 0 : index
    %16 = vector.load %arg7[%c0_7, %c0_8] : memref<32x128xf32, #tpu.memory_space<vmem>>, vector<32x128xf32>
    tpu.vector_store %arg7[%c0_7, %c0_8], %15 {strides = array<i32>} : memref<32x128xf32, #tpu.memory_space<vmem>>, vector<32x128xf32>,
    return
  }
  func.func @transform_0(%arg0: i32, %arg1: memref<129xi32, #tpu.memory_space<smem>>, %arg2: memref<256xi32, #tpu.memory_space<smem>>, %arg3: memref<256xi32, #tpu.memory_space<smem>>) -> i32 {
    %c0_i32 = arith.constant 0 : i32
    %c0_i32_0 = arith.constant 0 : i32
    return %c0_i32 : i32
  }
  func.func @transform_1(%arg0: i32, %arg1: memref<129xi32, #tpu.memory_space<smem>>, %arg2: memref<256xi32, #tpu.memory_space<smem>>, %arg3: memref<256xi32, #tpu.memory_space<smem>>) -> (i32, i32) {
    %c0_i32 = arith.constant 0 : i32
    %c0_i32_0 = arith.constant 0 : i32
    %c0_i32_1 = arith.constant 0 : i32
    return %c0_i32, %c0_i32_0 : i32, i32
  }
  func.func @transform_2(%arg0: i32, %arg1: memref<129xi32, #tpu.memory_space<smem>>, %arg2: memref<256xi32, #tpu.memory_space<smem>>, %arg3: memref<256xi32, #tpu.memory_space<smem>>) -> (i32, i32) {
    %c0_i32 = arith.constant 0 : i32
    %c0_i32_0 = arith.constant 0 : i32
    %c0_i32_1 = arith.constant 0 : i32
    return %c0_i32, %c0_i32_0 : i32, i32
  }
  func.func @transform_3(%arg0: i32, %arg1: memref<129xi32, #tpu.memory_space<smem>>, %arg2: memref<256xi32, #tpu.memory_space<smem>>, %arg3: memref<256xi32, #tpu.memory_space<smem>>) -> (i32, i32) {
    %c0_i32 = arith.constant 0 : i32
    %c0_i32_0 = arith.constant 0 : i32
    return %arg0, %c0_i32 : i32, i32
  }
}

</mosaic_0001>

<llo_original>
// kernel: tpu_custom_call.1
$region0: #{tpu_custom_call.1}
  #allocation0 [shape = 'u32[]', space=smem, size = 0x4, offset = 0x4, fixed_abs, tag = 'smem constant byte address 0x4 - core index']
  #allocation1 [shape = 'u32[144,128]{1,0:T(1,128)}', space=vmem, size = 0x12000, scoped, tag = 'internal scratch']
  #allocation2 [shape = 's32[1]{0}', space=sflag, size = 0x4, scoped, tag = 'scoped memory for tpu_custom_call.1']
  #allocation3 [shape = 'u8[1024]{0}', space=smem, size = 0x400, scoped, tag = 'prefetched SMEM operand 0']
  #allocation4 [shape = 'u8[1024]{0}', space=smem, size = 0x400, scoped, tag = 'prefetched SMEM operand 1']
  #allocation5 [shape = 'u8[1024]{0}', space=smem, size = 0x400, scoped, tag = 'prefetched SMEM operand 2']
  %s0 = inlined_call_operand.hbm [shape: s32[129], index: 0, kind: input, shape index: {}]
  %s1 = inlined_call_operand.vmem [shape: s32[256], index: 1, kind: input, shape index: {}]
  %s2 = inlined_call_operand.vmem [shape: s32[256], index: 2, kind: input, shape index: {}]
  %s3 = inlined_call_operand.vmem [shape: f32[256], index: 3, kind: input, shape index: {}]
  %s4 = inlined_call_operand.hbm [shape: f32[128,128], index: 4, kind: input, shape index: {}]
  %s5 = inlined_call_operand.vmem [shape: f32[1,128], index: 5, kind: input, shape index: {}]
  %s6 = inlined_call_operand.hbm [shape: f32[128,128], index: 6, kind: output, shape index: {}]
  %s7 = sld [smem:[#allocation0]]
  $region60: #{tpu_custom_call.1} parent=0
    _
  %s9 = ssub.s32 1, %s7
  %s10 = scalar_select 0, %s9, %s7
  %12 = dma.hbm_to_smem %s0, 32, [#allocation3], [#allocation2]
  %s13 = sshll.u32 %s1, 4
  %s14 = int_to_ptr.vmem [resolvable:$true] %s13
  %16 = dma.vmem_to_smem %s14, 32, [#allocation4], [#allocation2]
  %s17 = sshll.u32 %s2, 4
  %s18 = int_to_ptr.vmem [resolvable:$true] %s17
  %20 = dma.vmem_to_smem %s18, 32, [#allocation5], [#allocation2]
  %21 = dma.done [#allocation2], 96
  %22 = sfence
  $region1: #{tpu_custom_call.1} parent=0
    #allocation6 [shape = 'u8[1024]{0}', space=smem, size = 0x400, scoped, tag = 'input window, operand 3, single buffered']
    #allocation7 [shape = 's32[2]{0}', space=sflag, size = 0x8, scoped, tag = 'scoped memory for tpu_custom_call.1']
    #allocation8 [shape = 's32[2]{0}', space=sflag, size = 0x8, scoped, tag = 'scoped memory for tpu_custom_call.1']
    #allocation9 [shape = 's32[2]{0}', space=sflag, size = 0x8, scoped, tag = 'scoped memory for tpu_custom_call.1']
    #allocation10 [shape = 'u8[65536]{0}', space=vmem, size = 0x10000, scoped, tag = 'input window, operand 4, single buffered']
    #allocation11 [shape = 'u8[32768]{0}', space=vmem, size = 0x8000, scoped, tag = 'output window, operand 0']
    %23 = vsyncpa [#allocation9], 0
    %24 = vsyncpa [#allocation7], 0
    %25 = vsyncpa [#allocation8], 0
    %s26 = scalar_lea.sflag [#allocation8], 1
    %27 = vsyncpa %s26, 0
    loop: start=0, step=1, limit=6
    $region2: #{tpu_custom_call.1} parent=1 // loop_pre_header
      _
    $region3: #{tpu_custom_call.1} parent=1 // loop_header
      %s29 = sphi 0, %s33
      %p30 = scmp.ge.s32.totalorder %s29, 6
      %s37 = sphi 0, %s37
      %s39 = sphi 0, %s37
      %s40 = sphi 0, %s39
      %s54 = sphi 0, %s40
      %s58 = sphi 0, %s58
      %s60 = sphi 0, %s58
      %s61 = sphi 0, %s60
      %s75 = sphi 0, %s61
      %s79 = sphi 0, %s79
      %s81 = sphi 0, %s79
      %s82 = sphi 0, %s81
      %s96 = sphi 0, %s82
      %s102 = sphi 0, %s104
      %s105 = sphi 0, %s102
      %s106 = sphi 0, %s105
      %s122 = sphi 0, %s106
    $region4: #{tpu_custom_call.1} parent=1 // loop_header_branch
      %32 = sbr.rel (%p30) target = $region8
    $region5: #{tpu_custom_call.1} parent=1 // loop_body
      %s34 = ssub.s32 %s29, 1
      %s35 = ssub.s32 %s29, 2
      %s36 = sadd.s32 %s29, 1
      %s38 = sadd.s32 %s37, 1
      %p41 = scmp.eq.s32.totalorder %s29, 3
      %p42 = scmp.ne.s32.totalorder %s37, %s39
      %p43 = scmp.eq.s32.totalorder %s29, 0
      %p44 = por %p42, %p43
      %p45 = scmp.ne.s32.totalorder %s37, %s39
      %p46 = scmp.eq.s32.totalorder %s34, 3
      %p47 = por %p45, %p46
      %p48 = scmp.ne.s32.totalorder %s39, %s40
      %p49 = scmp.eq.s32.totalorder %s34, 0
      %p50 = por %p48, %p49
      %p51 = scmp.ne.s32.totalorder %s39, %s40
      %p52 = scmp.eq.s32.totalorder %s35, 3
      %p53 = por %p51, %p52
      %p55 = scmp.ne.s32.totalorder %s40, %s54
      %p56 = scmp.eq.s32.totalorder %s35, 0
      %p57 = por %p55, %p56
      %s59 = sadd.s32 %s58, 1
      %p62 = scmp.eq.s32.totalorder %s29, 3
      %p63 = scmp.ne.s32.totalorder %s58, %s60
      %p64 = scmp.eq.s32.totalorder %s29, 0
      %p65 = por %p63, %p64
      %p66 = scmp.ne.s32.totalorder %s58, %s60
      %p67 = scmp.eq.s32.totalorder %s34, 3
      %p68 = por %p66, %p67
      %p69 = scmp.ne.s32.totalorder %s60, %s61
      %p70 = scmp.eq.s32.totalorder %s34, 0
      %p71 = por %p69, %p70
      %p72 = scmp.ne.s32.totalorder %s60, %s61
      %p73 = scmp.eq.s32.totalorder %s35, 3
      %p74 = por %p72, %p73
      %p76 = scmp.ne.s32.totalorder %s61, %s75
      %p77 = scmp.eq.s32.totalorder %s35, 0
      %p78 = por %p76, %p77
      %s80 = sadd.s32 %s79, 1
      %p83 = scmp.eq.s32.totalorder %s29, 3
      %p84 = scmp.ne.s32.totalorder %s79, %s81
      %p85 = scmp.eq.s32.totalorder %s29, 0
      %p86 = por %p84, %p85
      %p87 = scmp.ne.s32.totalorder %s79, %s81
      %p88 = scmp.eq.s32.totalorder %s34, 3
      %p89 = por %p87, %p88
      %p90 = scmp.ne.s32.totalorder %s81, %s82
      %p91 = scmp.eq.s32.totalorder %s34, 0
      %p92 = por %p90, %p91
      %p93 = scmp.ne.s32.totalorder %s81, %s82
      %p94 = scmp.eq.s32.totalorder %s35, 3
      %p95 = por %p93, %p94
      %p97 = scmp.ne.s32.totalorder %s82, %s96
      %p98 = scmp.eq.s32.totalorder %s35, 0
      %p99 = por %p97, %p98
      %s100 = ssub.s32 %s29, %s36
      %p101 = scmp.eq.s32.totalorder %s100, 0
      %s103 = sadd.s32 %s102, 1
      %s104 = scalar_select %p101, %s102, %s103
      %p107 = pneg %p101
      %p108 = scmp.eq.s32.totalorder %s29, 3
      %p109 = por %p107, %p108
      %p110 = scmp.ne.s32.totalorder %s102, %s105
      %p111 = scmp.eq.s32.totalorder %s29, 0
      %p112 = por %p110, %p111
      %p113 = scmp.ne.s32.totalorder %s102, %s105
      %p114 = scmp.eq.s32.totalorder %s34, 3
      %p115 = por %p113, %p114
      %p116 = scmp.ne.s32.totalorder %s105, %s106
      %p117 = scmp.eq.s32.totalorder %s34, 0
      %p118 = por %p116, %p117
      %p119 = scmp.ne.s32.totalorder %s105, %s106
      %p120 = scmp.eq.s32.totalorder %s35, 3
      %p121 = por %p119, %p120
      %p123 = scmp.ne.s32.totalorder %s106, %s122
      %p124 = scmp.eq.s32.totalorder %s35, 0
      %p125 = por %p123, %p124
      %p126 = scmp.le.s32.totalorder 1, %s29
      %p127 = scmp.lt.s32.totalorder %s29, 5
      %p128 = pnand %p126, %p127
      %p129 = pneg %p128
      // Predicated region
      $region9: #{tpu_custom_call.1} parent=5 // pred_check
        _
      $region10: #{tpu_custom_call.1} parent=5 // pred_check_branch
        %131 = sbr.rel (%p128) target = $region12
      $region11: #{tpu_custom_call.1} parent=5 // pred_region
        %s132 = ssub.s32 %s29, 1
        // Predicated region
        $region13: #{tpu_custom_call.1} parent=11 // pred_check
          %p133 = pneg %p50
        $region14: #{tpu_custom_call.1} parent=11 // pred_check_branch
          %135 = sbr.rel (%p133) target = $region16
        $region15: #{tpu_custom_call.1} parent=11 // pred_region
          %s137 = ssub.s32 32, 32
          %138 = vsyncadd [#allocation9], %s137
          %s140 = sshll.u32 %s3, 4
          %s141 = int_to_ptr.vmem [resolvable:$true] %s140
          %143 = dma.vmem_to_smem %s141, 32, [#allocation6], [#allocation9]
        $region16: #{tpu_custom_call.1} parent=11 // pred_fallthru
          _
        // Predicated region
        $region17: #{tpu_custom_call.1} parent=11 // pred_check
          %p144 = pneg %p71
        $region18: #{tpu_custom_call.1} parent=11 // pred_check_branch
          %146 = sbr.rel (%p144) target = $region20
        $region19: #{tpu_custom_call.1} parent=11 // pred_region
          %s148 = ssub.s32 2048, 2048
          %149 = vsyncadd [#allocation7], %s148
          %s150 = sshll.u32 [#allocation10], 4
          %s151 = int_to_ptr.vmem [resolvable:$true] %s150
          %156 = dma.hbm_to_vmem [thread:$0]  %s4, 2048, %s151, [#allocation7], 128, 128, 8
        $region20: #{tpu_custom_call.1} parent=11 // pred_fallthru
          _
        // Predicated region
        $region21: #{tpu_custom_call.1} parent=11 // pred_check
          %p157 = pneg %p92
        $region22: #{tpu_custom_call.1} parent=11 // pred_check_branch
          %159 = sbr.rel (%p157) target = $region24
        $region23: #{tpu_custom_call.1} parent=11 // pred_region
          _
        $region24: #{tpu_custom_call.1} parent=11 // pred_fallthru
          _
      $region12: #{tpu_custom_call.1} parent=5 // pred_fallthru
        _
      %p160 = scmp.lt.s32.totalorder %s29, 4
      // Predicated region
      $region25: #{tpu_custom_call.1} parent=5 // pred_check
        %p161 = pneg %p160
      $region26: #{tpu_custom_call.1} parent=5 // pred_check_branch
        %163 = sbr.rel (%p161) target = $region28
      $region27: #{tpu_custom_call.1} parent=5 // pred_region
        _
      $region28: #{tpu_custom_call.1} parent=5 // pred_fallthru
        _
      %p164 = scmp.le.s32.totalorder 1, %s29
      %p165 = scmp.lt.s32.totalorder %s29, 5
      %p166 = pnand %p164, %p165
      %p167 = pneg %p166
      // Predicated region
      $region29: #{tpu_custom_call.1} parent=5 // pred_check
        _
      $region30: #{tpu_custom_call.1} parent=5 // pred_check_branch
        %169 = sbr.rel (%p166) target = $region32
      $region31: #{tpu_custom_call.1} parent=5 // pred_region
        %s170 = ssub.s32 %s29, 1
        // Predicated region
        $region33: #{tpu_custom_call.1} parent=31 // pred_check
          %p171 = pneg %p50
        $region34: #{tpu_custom_call.1} parent=31 // pred_check_branch
          %173 = sbr.rel (%p171) target = $region36
        $region35: #{tpu_custom_call.1} parent=31 // pred_region
          %174 = dma.done [#allocation9], 32
        $region36: #{tpu_custom_call.1} parent=31 // pred_fallthru
          _
        // Predicated region
        $region37: #{tpu_custom_call.1} parent=31 // pred_check
          %p175 = pneg %p71
        $region38: #{tpu_custom_call.1} parent=31 // pred_check_branch
          %177 = sbr.rel (%p175) target = $region40
        $region39: #{tpu_custom_call.1} parent=31 // pred_region
          %178 = dma.done [#allocation7], 2048
        $region40: #{tpu_custom_call.1} parent=31 // pred_fallthru
          _
        %179 = sfence
        %p180 = pneg %p50
        %p181 = pneg %p47
        %p182 = pneg %p71
        %p183 = pneg %p68
        %p184 = pneg %p92
        %p185 = pneg %p89
        %p186 = pneg %p118
        %p187 = pneg %p115
        %s188 = sand.u32 %s105, 1
        %s189 = scalar_lea.sflag [#allocation8], %s188
        %s190 = sand.u32 %s105, 1
        %s191 = smul.addr %s190, 32
        %s192 = scalar_lea.vmem [#allocation11], %s191
        %s193 = smul.u32 4, %s34
        %s194 = smul.u32 %s34, 32
        %s195 = sld [smem:[#allocation3 + %s194]]
        %s196 = sadd.s32 %s194, 32
        %s197 = sld [smem:[#allocation3 + %s196]]
        %198 = vst [vmem:[%s192] sm:$0xff] 0.0
        %199 = vst [vmem:[%s192 + $0x8] sm:$0xff] 0.0
        %200 = vst [vmem:[%s192 + $0x10] sm:$0xff] 0.0
        %201 = vst [vmem:[%s192 + $0x18] sm:$0xff] 0.0
        // While loop
        $region41: #{tpu_custom_call.1} parent=31 // loop_pre_header
          _
        $region42: #{tpu_custom_call.1} parent=31 // loop_header
          %s203 = sphi %s195, %s205
          %p204 = scmp.ge.s32.totalorder %s203, %s197
        $region43: #{tpu_custom_call.1} parent=31 // loop_header_branch
          %207 = sbr.rel (%p204) target = $region47
        $region44: #{tpu_custom_call.1} parent=31 // loop_body
          %s208 = sld [smem:[#allocation5 + %s203]]
          %s209 = ssub.s32 %s208, %s194
          %s210 = sld [smem:[#allocation4 + %s203]]
          %s211 = sld [smem:[#allocation6 + %s203]]
          %s212 = scalar_lea.vmem %s192, %s209 [#allocation11]
          %v213 = vld [vmem:[%s212] sm:$0x1]
          %s214 = scalar_lea.vmem [#allocation10], %s210
          %v215 = vld [vmem:[%s214] sm:$0x1]
          %v216 = vstv %s211
          %v217 = vmul.f32 %v216, %v215
          %v218 = vadd.f32 %v213, %v217
          %219 = vst [vmem:[%s212] sm:$0x1] %v218
        $region45: #{tpu_custom_call.1} parent=31 // loop_footer
          %s205 = sadd.s32 %s203, 1
        $region46: #{tpu_custom_call.1} parent=31 // loop_footer_branch
          %202 = sbr.rel target = $region42
        $region47: #{tpu_custom_call.1} parent=31 // loop_exit
          _
        %v220 = vld [vmem:[%s192] sm:$0xff]
        %v221 = vld [vmem:[%s192 + $0x8] sm:$0xff]
        %v222 = vld [vmem:[%s192 + $0x10] sm:$0xff]
        %v223 = vld [vmem:[%s192 + $0x18] sm:$0xff]
        %v224 = vld [vmem:[%s5] sm:$0x1]
        %v226 = vlaneseq
        %v227 = vshrl.u32 %v226, 7
        %v228 = vsub.s32 0, %v227
        %v229 = vrot.slane %v224, %v228
        %v231 = vadd.f32 %v220, %v229
        %v232 = vadd.f32 %v221, %v229
        %v233 = vadd.f32 %v222, %v229
        %v234 = vadd.f32 %v223, %v229
        %v235 = vmax.f32 %v231, 0.0
        %v236 = vmax.f32 %v232, 0.0
        %v237 = vmax.f32 %v233, 0.0
        %v238 = vmax.f32 %v234, 0.0
        %239 = vst [vmem:[%s192] sm:$0xff] %v235
        %240 = vst [vmem:[%s192 + $0x8] sm:$0xff] %v236
        %241 = vst [vmem:[%s192 + $0x10] sm:$0xff] %v237
        %242 = vst [vmem:[%s192 + $0x18] sm:$0xff] %v238
        %s243 = sand.u32 %s105, 1
        %s244 = scalar_lea.sflag [#allocation8], %s243
        %s245 = sand.u32 %s105, 1
        %s246 = smul.addr %s245, 32
        %s247 = scalar_lea.vmem [#allocation11], %s246
        // Predicated region
        $region48: #{tpu_custom_call.1} parent=31 // pred_check
          %p248 = pneg %p115
        $region49: #{tpu_custom_call.1} parent=31 // pred_check_branch
          %250 = sbr.rel (%p248) target = $region51
        $region50: #{tpu_custom_call.1} parent=31 // pred_region
          %s251 = smul.u32 4, %s34
          %s253 = ssub.s32 512, 512
          %254 = vsyncadd %s244, %s253
          %s255 = smul.addr %s251, 128
          %s256 = scalar_lea.hbm %s6, %s255
          %s257 = sshll.u32 %s247, 4
          %s258 = int_to_ptr.vmem [resolvable:$true] %s257
          %263 = dma.vmem_to_hbm [thread:$0]  %s258, 512, %s256, %s244, 128, 128, 8
        $region51: #{tpu_custom_call.1} parent=31 // pred_fallthru
          _
      $region32: #{tpu_custom_call.1} parent=5 // pred_fallthru
        _
      %p264 = scmp.le.s32.totalorder 2, %s29
      // Predicated region
      $region52: #{tpu_custom_call.1} parent=5 // pred_check
        %p265 = pneg %p264
      $region53: #{tpu_custom_call.1} parent=5 // pred_check_branch
        %267 = sbr.rel (%p265) target = $region55
      $region54: #{tpu_custom_call.1} parent=5 // pred_region
        %s268 = ssub.s32 %s29, 2
        // Predicated region
        $region56: #{tpu_custom_call.1} parent=54 // pred_check
          %p269 = pneg %p121
        $region57: #{tpu_custom_call.1} parent=54 // pred_check_branch
          %271 = sbr.rel (%p269) target = $region59
        $region58: #{tpu_custom_call.1} parent=54 // pred_region
          %s272 = sand.u32 %s106, 1
          %s273 = scalar_lea.sflag [#allocation8], %s272
          %s274 = sand.u32 %s106, 1
          %s275 = smul.addr %s274, 32
          %s276 = scalar_lea.vmem [#allocation11], %s275
          %277 = dma.done %s273, 512
        $region59: #{tpu_custom_call.1} parent=54 // pred_fallthru
          _
      $region55: #{tpu_custom_call.1} parent=5 // pred_fallthru
        _
    $region6: #{tpu_custom_call.1} parent=1 // loop_footer
      %s33 = sadd.s32 1, %s29
    $region7: #{tpu_custom_call.1} parent=1 // loop_footer_branch
      %28 = sbr.rel target = $region3
    $region8: #{tpu_custom_call.1} parent=1 // loop_exit
      _
    %278 = vsyncpa [#allocation7], 1
    %s279 = scalar_lea.sflag [#allocation7], 1
    %280 = vsyncpa %s279, 1
    %281 = vsyncpa [#allocation8], 1
    %s282 = scalar_lea.sflag [#allocation8], 1
    %283 = vsyncpa %s282, 1
    %284 = vsyncpa [#allocation9], 1
    %s285 = scalar_lea.sflag [#allocation9], 1
    %286 = vsyncpa %s285, 1

</llo_original>
